<compile_context>
chip_gen: v7x
topology: tpu7x:2x2x1
jax: 0.10.0
libtpu: 0.0.40
codegen_flags: <defaults>
</compile_context>

<pallas_src>
import functools

import jax
import jax.numpy as jnp
import numpy as np
from jax.experimental import pallas as pl
from jax.experimental.pallas import tpu as pltpu


# --------------------------------------------------------------------------
# Kernel
# --------------------------------------------------------------------------
def _fused_kernel(ids_ref, h_ref, w1_ref, c1_ref, b1_ref, w2_ref, b2_ref,
                  out_ref, *, act_cols, compute_dtype):
    f32 = jnp.float32

    h = h_ref[...].astype(compute_dtype)                    # (TB, H)
    ids = ids_ref[...]                                       # (TB, 1) int32
    tb = ids.shape[0]
    num_codes = c1_ref.shape[0]

    # Embedding lookup as one-hot @ (emb @ pw1_c) -- num_codes is tiny here.
    # Out-of-range ids yield zero code features (PyTorch would raise).
    onehot = (jax.lax.broadcasted_iota(jnp.int32, (tb, num_codes), 1)
              == ids).astype(compute_dtype)                  # (TB, NC)

    # Fused first layer: [tr_l1 | re_l1 | prior_l1]  (one h-push + one code-push)
    z = (jnp.dot(h, w1_ref[...], preferred_element_type=f32)
         + jnp.dot(onehot, c1_ref[...], preferred_element_type=f32)
         + b1_ref[...].astype(f32))                          # (TB, 2*half + P)

    # SiLU on the tr/re hidden columns only; prior columns stay linear.
    col = jax.lax.broadcasted_iota(jnp.int32, z.shape, 1)
    z = jnp.where(col < act_cols, z * jax.nn.sigmoid(z), z)

    # Fused second layer (block-diagonal): one matmul -> [tr | re | mu | lv]
    out = (jnp.dot(z.astype(compute_dtype), w2_ref[...],
                   preferred_element_type=f32)
           + b2_ref[...].astype(f32))                        # (TB, 4*F)
    out_ref[...] = out.astype(out_ref.dtype)


# --------------------------------------------------------------------------
# One-time weight fusion (wrapper-side, never inside the kernel)
# --------------------------------------------------------------------------
def fuse_params(params, compute_dtype=jnp.float32):
    hp = jax.lax.Precision.HIGHEST
    f32 = jnp.float32

    hidden_dim, half = params["tr_w1"].shape
    feat_dim = params["tr_w2"].shape[1]
    prior_hidden = params["pw1_h"].shape[1]
    num_codes = params["emb"].shape[0]

    k1 = 2 * half + prior_hidden          # fused hidden width
    n2 = 4 * feat_dim                     # fused output width [tr|re|mu|lv]

    # First layer: concat along output columns.
    w1 = jnp.concatenate(
        [params["tr_w1"], params["re_w1"], params["pw1_h"]], axis=1)       # (H, k1)
    b1 = jnp.concatenate(
        [params["tr_b1"], params["re_b1"], params["pb1"]], axis=1)         # (1, k1)

    # Embedding folded into the prior first layer: emb @ pw1_c, zero-padded
    # so it only touches the prior columns of z.
    c1 = jnp.concatenate(
        [jnp.zeros((num_codes, 2 * half), f32),
         jnp.dot(params["emb"], params["pw1_c"], precision=hp)], axis=1)   # (NC, k1)

    # Second layer: block-diagonal diag(tr_w2, re_w2, pw2).
    w2 = jnp.zeros((k1, n2), f32)
    w2 = w2.at[:half, :feat_dim].set(params["tr_w2"])
    w2 = w2.at[half:2 * half, feat_dim:2 * feat_dim].set(params["re_w2"])
    w2 = w2.at[2 * half:, 2 * feat_dim:].set(params["pw2"])
    b2 = jnp.concatenate(
        [params["tr_b2"], params["re_b2"], params["pb2"]], axis=1)         # (1, n2)

    return {
        "w1": w1.astype(compute_dtype),
        "c1": c1.astype(compute_dtype),
        "b1": b1.astype(f32),
        "w2": w2.astype(compute_dtype),
        "b2": b2.astype(f32),
        "act_cols": 2 * half,
        "feature_dim": feat_dim,
        "hidden_dim": hidden_dim,
        "compute_dtype": compute_dtype,
    }


# --------------------------------------------------------------------------
# Wrapper
# --------------------------------------------------------------------------
def causal_encoder_confounder(h, code_ids, fused, *, block_b=256):
    """h: [B, hidden_dim] f32, code_ids: [B] int32."""
    B, H = h.shape
    F = fused["feature_dim"]
    K1 = fused["w1"].shape[1]
    N2 = fused["w2"].shape[1]
    NC = fused["c1"].shape[0]
    compute_dtype = fused["compute_dtype"]

    # Batch tile: keep weights resident, stream h / ids / output tiles.
    tb = B if B <= block_b else block_b
    pad = (-B) % tb
    if pad:
        h = jnp.pad(h, ((0, pad), (0, 0)))
        code_ids = jnp.pad(code_ids, ((0, pad),))
    Bp = B + pad
    ids2d = code_ids.reshape(Bp, 1).astype(jnp.int32)

    kern = functools.partial(
        _fused_kernel, act_cols=fused["act_cols"], compute_dtype=compute_dtype)

    combined = pl.pallas_call(
        kern,
        out_shape=jax.ShapeDtypeStruct((Bp, N2), jnp.float32),
        grid=(Bp // tb,),
        in_specs=[
            pl.BlockSpec((tb, 1), lambda i: (i, 0)),    # code ids (streamed)
            pl.BlockSpec((tb, H), lambda i: (i, 0)),    # h        (streamed)
            pl.BlockSpec((H, K1), lambda i: (0, 0)),    # W1 fused (resident)
            pl.BlockSpec((NC, K1), lambda i: (0, 0)),   # C1 fused (resident)
            pl.BlockSpec((1, K1), lambda i: (0, 0)),    # b1 fused (resident)
            pl.BlockSpec((K1, N2), lambda i: (0, 0)),   # W2 block-diag (resident)
            pl.BlockSpec((1, N2), lambda i: (0, 0)),    # b2 fused (resident)
        ],
        out_specs=pl.BlockSpec((tb, N2), lambda i: (i, 0)),
        compiler_params=pltpu.CompilerParams(
            dimension_semantics=("parallel",)),
    )(ids2d, h, fused["w1"], fused["c1"], fused["b1"], fused["w2"], fused["b2"])

    combined = combined[:B]
    # Wrapper-side split of the lane-dense slab (free layout plumbing).
    return {
        "tr_features": combined[:, :F],
        "re_features": combined[:, F:2 * F],
        "confounder_mu": combined[:, 2 * F:3 * F],
        "confounder_logvar": combined[:, 3 * F:],
    }


# --------------------------------------------------------------------------
# Parameter init (shapes follow the nn.Module; weights stored [in, out])
# --------------------------------------------------------------------------
def init_params(key, hidden_dim, code_dim, num_codes, prior_hidden=512):
    half = hidden_dim // 2
    feature_dim = code_dim
    keys = jax.random.split(key, 16)

    def w(k, shape, scale=0.05):
        return (scale * jax.random.normal(k, shape)).astype(jnp.float32)

    return {
        # tr_proj MLP: Linear(H, H//2) -> SiLU -> Linear(H//2, code_dim)
        "tr_w1": w(keys[0], (hidden_dim, half)),
        "tr_b1": w(keys[1], (1, half)),
        "tr_w2": w(keys[2], (half, code_dim)),
        "tr_b2": w(keys[3], (1, code_dim)),
        # re_proj MLP
        "re_w1": w(keys[4], (hidden_dim, half)),
        "re_b1": w(keys[5], (1, half)),
        "re_w2": w(keys[6], (half, code_dim)),
        "re_b2": w(keys[7], (1, code_dim)),
        # code embedding
        "emb": w(keys[8], (num_codes, code_dim), scale=1.0),
        # prior network: Linear(hidden_dim + code_dim, 512) -> Linear(512, 2*feature_dim)
        # (assumes params.hidden_dim == params.hidden_state_dim, as in the module usage)
        "pw1_h": w(keys[9], (hidden_dim, prior_hidden)),
        "pw1_c": w(keys[10], (code_dim, prior_hidden)),
        "pb1": w(keys[11], (1, prior_hidden)),
        "pw2": w(keys[12], (prior_hidden, 2 * feature_dim)),
        "pb2": w(keys[13], (1, 2 * feature_dim)),
    }


# --------------------------------------------------------------------------
# Pure-JAX reference (for a sanity check against the fused kernel)
# --------------------------------------------------------------------------
def reference_forward(h, code_ids, params):
    hp = jax.lax.Precision.HIGHEST

    def mlp(x, w1, b1, w2, b2):
        t = jnp.dot(x, w1, precision=hp) + b1
        t = t * jax.nn.sigmoid(t)
        return jnp.dot(t, w2, precision=hp) + b2

    tr = mlp(h, params["tr_w1"], params["tr_b1"], params["tr_w2"], params["tr_b2"])
    re = mlp(h, params["re_w1"], params["re_b1"], params["re_w2"], params["re_b2"])
    code = params["emb"][code_ids]
    p1 = (jnp.dot(h, params["pw1_h"], precision=hp)
          + jnp.dot(code, params["pw1_c"], precision=hp) + params["pb1"])
    p2 = jnp.dot(p1, params["pw2"], precision=hp) + params["pb2"]
    F = params["tr_w2"].shape[1]
    return {"tr_features": tr, "re_features": re,
            "confounder_mu": p2[:, :F], "confounder_logvar": p2[:, F:]}


if __name__ == "__main__":
    # small shapes: batch=8, hidden_state_dim = hidden_dim = 32,
    # code_dim = feature_dim = 16, num_codes = 8
    B, HIDDEN, CODE_DIM, NUM_CODES = 8, 32, 16, 8

    key = jax.random.PRNGKey(0)
    k_h, k_ids, k_p = jax.random.split(key, 3)

    h = jax.random.normal(k_h, (B, HIDDEN), dtype=jnp.float32)
    code_ids = jax.random.randint(k_ids, (B,), 0, NUM_CODES, dtype=jnp.int32)
    params = init_params(k_p, HIDDEN, CODE_DIM, NUM_CODES)

    # One-time weight fusion (use compute_dtype=jnp.bfloat16 for bf16 MXU ops).
    fused = fuse_params(params, compute_dtype=jnp.float32)

    out = causal_encoder_confounder(h, code_ids, fused)
    jax.block_until_ready(out)

    # sanity: shapes + loose numeric check against a pure-JAX reference
    assert out["tr_features"].shape == (B, CODE_DIM)
    assert out["re_features"].shape == (B, CODE_DIM)
    assert out["confounder_mu"].shape == (B, CODE_DIM)
    assert out["confounder_logvar"].shape == (B, CODE_DIM)

    ref = reference_forward(h, code_ids, params)
    for name in ("tr_features", "re_features", "confounder_mu", "confounder_logvar"):
        np.testing.assert_allclose(np.asarray(out[name]), np.asarray(ref[name]),
                                   rtol=2e-2, atol=1e-3)

    print("KERNEL_OK")
</pallas_src>

<mosaic_0001>
module attributes {stable_mosaic.version = 11 : i64} {
  func.func @_fused_kernel(%arg0: i32, %arg1: memref<8x1xi32, #tpu.memory_space<vmem>>, %arg2: memref<8x32xf32, #tpu.memory_space<vmem>>, %arg3: memref<32x544xf32, #tpu.memory_space<vmem>>, %arg4: memref<8x544xf32, #tpu.memory_space<vmem>>, %arg5: memref<1x544xf32, #tpu.memory_space<vmem>>, %arg6: memref<544x64xf32, #tpu.memory_space<vmem>>, %arg7: memref<1x64xf32, #tpu.memory_space<vmem>>, %arg8: memref<8x64xf32, #tpu.memory_space<vmem>>) attributes {dimension_semantics = [#tpu.dimension_semantics<parallel>], iteration_bounds = array<i64: 1>, scalar_prefetch = 0 : i64, scratch_operands = 0 : i64, tpu.core_type = #tpu.core_type<tc>, window_params = [{transform_indices = @transform_0, window_bounds = array<i64: 8, 1>}, {transform_indices = @transform_1, window_bounds = array<i64: 8, 32>}, {pipeline_mode = #tpu.pipeline_mode<synchronous>, transform_indices = @transform_2, window_bounds = array<i64: 32, 544>}, {pipeline_mode = #tpu.pipeline_mode<synchronous>, transform_indices = @transform_3, window_bounds = array<i64: 8, 544>}, {pipeline_mode = #tpu.pipeline_mode<synchronous>, transform_indices = @transform_4, window_bounds = array<i64: 1, 544>}, {pipeline_mode = #tpu.pipeline_mode<synchronous>, transform_indices = @transform_5, window_bounds = array<i64: 544, 64>}, {pipeline_mode = #tpu.pipeline_mode<synchronous>, transform_indices = @transform_6, window_bounds = array<i64: 1, 64>}, {transform_indices = @transform_7, window_bounds = array<i64: 8, 64>}]} {
    %c0 = arith.constant 0 : index
    %c0_0 = arith.constant 0 : index
    %0 = vector.load %arg2[%c0, %c0_0] : memref<8x32xf32, #tpu.memory_space<vmem>>, vector<8x32xf32>
    %c0_1 = arith.constant 0 : index
    %c0_2 = arith.constant 0 : index
    %1 = vector.load %arg1[%c0_1, %c0_2] : memref<8x1xi32, #tpu.memory_space<vmem>>, vector<8x1xi32>
    %2 = tpu.iota {dimensions = array<i32: 1>} : vector<8x8xi32>
    %3 = vector.broadcast %1 : vector<8x1xi32> to vector<8x8xi32>
    %4 = arith.cmpi eq, %2, %3 : vector<8x8xi32>
    %5 = arith.extui %4 : vector<8x8xi1> to vector<8x8xi32>
    %6 = arith.sitofp %5 : vector<8x8xi32> to vector<8x8xf32>
    %c0_3 = arith.constant 0 : index
    %c0_4 = arith.constant 0 : index
    %7 = vector.load %arg3[%c0_3, %c0_4] : memref<32x544xf32, #tpu.memory_space<vmem>>, vector<32x544xf32>
    %cst = arith.constant dense<0.000000e+00> : vector<8x544xf32>
    %8 = tpu.matmul %0, %7, %cst {dimension_numbers = #tpu.dot_dimension_numbers<[1], [0], [0], [1], [0, 0, 1, 1], [], []>} : vector<8x32xf32>, vector<32x544xf32>, vector<8x544xf32> -> vector<8x544xf32>
    %c0_5 = arith.constant 0 : index
    %c0_6 = arith.constant 0 : index
    %9 = vector.load %arg4[%c0_5, %c0_6] : memref<8x544xf32, #tpu.memory_space<vmem>>, vector<8x544xf32>
    %cst_7 = arith.constant dense<0.000000e+00> : vector<8x544xf32>
    %10 = tpu.matmul %6, %9, %cst_7 {dimension_numbers = #tpu.dot_dimension_numbers<[1], [0], [0], [1], [0, 0, 1, 1], [], []>} : vector<8x8xf32>, vector<8x544xf32>, vector<8x544xf32> -> vector<8x544xf32>
    %11 = arith.addf %8, %10 : vector<8x544xf32>
    %c0_8 = arith.constant 0 : index
    %c0_9 = arith.constant 0 : index
    %12 = vector.load %arg5[%c0_8, %c0_9] : memref<1x544xf32, #tpu.memory_space<vmem>>, vector<1x544xf32>
    %13 = vector.broadcast %12 : vector<1x544xf32> to vector<8x544xf32>
    %14 = arith.addf %11, %13 : vector<8x544xf32>
    %15 = tpu.iota {dimensions = array<i32: 1>} : vector<8x544xi32>
    %c32_i32 = arith.constant 32 : i32
    %16 = vector.broadcast %c32_i32 : i32 to vector<8x544xi32>
    %17 = arith.cmpi slt, %15, %16 : vector<8x544xi32>
    %18 = arith.negf %14 : vector<8x544xf32>
    %19 = math.exp %18 : vector<8x544xf32>
    %cst_10 = arith.constant 1.000000e+00 : f32
    %20 = vector.broadcast %cst_10 : f32 to vector<8x544xf32>
    %21 = arith.addf %20, %19 : vector<8x544xf32>
    %22 = arith.divf %20, %21 : vector<8x544xf32>
    %23 = arith.mulf %14, %22 : vector<8x544xf32>
    %24 = arith.select %17, %23, %14 : vector<8x544xi1>, vector<8x544xf32>
    %c0_11 = arith.constant 0 : index
    %c0_12 = arith.constant 0 : index
    %25 = vector.load %arg6[%c0_11, %c0_12] : memref<544x64xf32, #tpu.memory_space<vmem>>, vector<544x64xf32>
    %cst_13 = arith.constant dense<0.000000e+00> : vector<8x64xf32>
    %26 = tpu.matmul %24, %25, %cst_13 {dimension_numbers = #tpu.dot_dimension_numbers<[1], [0], [0], [1], [0, 0, 1, 1], [], []>} : vector<8x544xf32>, vector<544x64xf32>, vector<8x64xf32> -> vector<8x64xf32>
    %c0_14 = arith.constant 0 : index
    %c0_15 = arith.constant 0 : index
    %27 = vector.load %arg7[%c0_14, %c0_15] : memref<1x64xf32, #tpu.memory_space<vmem>>, vector<1x64xf32>
    %28 = vector.broadcast %27 : vector<1x64xf32> to vector<8x64xf32>
    %29 = arith.addf %26, %28 : vector<8x64xf32>
    %c0_16 = arith.constant 0 : index
    %c0_17 = arith.constant 0 : index
    %30 = vector.load %arg8[%c0_16, %c0_17] : memref<8x64xf32, #tpu.memory_space<vmem>>, vector<8x64xf32>
    tpu.vector_store %arg8[%c0_16, %c0_17], %29 {strides = array<i32>} : memref<8x64xf32, #tpu.memory_space<vmem>>, vector<8x64xf32>,
    return
  }
  func.func @transform_0(%arg0: i32) -> (i32, i32) {
    %c0_i32 = arith.constant 0 : i32
    %c0_i32_0 = arith.constant 0 : i32
    return %arg0, %c0_i32 : i32, i32
  }
  func.func @transform_1(%arg0: i32) -> (i32, i32) {
    %c0_i32 = arith.constant 0 : i32
    %c0_i32_0 = arith.constant 0 : i32
    return %arg0, %c0_i32 : i32, i32
  }
  func.func @transform_2(%arg0: i32) -> (i32, i32) {
    %c0_i32 = arith.constant 0 : i32
    %c0_i32_0 = arith.constant 0 : i32
    %c0_i32_1 = arith.constant 0 : i32
    return %c0_i32, %c0_i32_0 : i32, i32
  }
  func.func @transform_3(%arg0: i32) -> (i32, i32) {
    %c0_i32 = arith.constant 0 : i32
    %c0_i32_0 = arith.constant 0 : i32
    %c0_i32_1 = arith.constant 0 : i32
    return %c0_i32, %c0_i32_0 : i32, i32
  }
  func.func @transform_4(%arg0: i32) -> (i32, i32) {
    %c0_i32 = arith.constant 0 : i32
    %c0_i32_0 = arith.constant 0 : i32
    %c0_i32_1 = arith.constant 0 : i32
    return %c0_i32, %c0_i32_0 : i32, i32
  }
  func.func @transform_5(%arg0: i32) -> (i32, i32) {
    %c0_i32 = arith.constant 0 : i32
    %c0_i32_0 = arith.constant 0 : i32
    %c0_i32_1 = arith.constant 0 : i32
    return %c0_i32, %c0_i32_0 : i32, i32
  }
  func.func @transform_6(%arg0: i32) -> (i32, i32) {
    %c0_i32 = arith.constant 0 : i32
    %c0_i32_0 = arith.constant 0 : i32
    %c0_i32_1 = arith.constant 0 : i32
    return %c0_i32, %c0_i32_0 : i32, i32
  }
  func.func @transform_7(%arg0: i32) -> (i32, i32) {
    %c0_i32 = arith.constant 0 : i32
    %c0_i32_0 = arith.constant 0 : i32
    return %arg0, %c0_i32 : i32, i32
  }
}

</mosaic_0001>

<llo_original>
// kernel: tpu_custom_call.1
$region0: #{tpu_custom_call.1}
  #allocation0 [shape = 'u32[]', space=smem, size = 0x4, offset = 0x4, fixed_abs, tag = 'smem constant byte address 0x4 - core index']
  #allocation1 [shape = 'u32[144,128]{1,0:T(1,128)}', space=vmem, size = 0x12000, scoped, tag = 'internal scratch']
  %s0 = inlined_call_operand.vmem [shape: s32[8,1], index: 0, kind: input, shape index: {}]
  %s1 = inlined_call_operand.vmem [shape: f32[8,32], index: 1, kind: input, shape index: {}]
  %s2 = inlined_call_operand.vmem [shape: f32[32,544], index: 2, kind: input, shape index: {}]
  %s3 = inlined_call_operand.vmem [shape: f32[8,544], index: 3, kind: input, shape index: {}]
  %s4 = inlined_call_operand.vmem [shape: f32[1,544], index: 4, kind: input, shape index: {}]
  %s5 = inlined_call_operand.vmem [shape: f32[544,64], index: 5, kind: input, shape index: {}]
  %s6 = inlined_call_operand.vmem [shape: f32[1,64], index: 6, kind: input, shape index: {}]
  %s7 = inlined_call_operand.hbm [shape: f32[8,64], index: 7, kind: output, shape index: {}]
  %s8 = sld [smem:[#allocation0]]
  $region38: #{tpu_custom_call.1} parent=0
    _
  %s10 = ssub.s32 1, %s8
  %s11 = scalar_select 0, %s10, %s8
  $region1: #{tpu_custom_call.1} parent=0
    #allocation2 [shape = 'u8[4096]{0}', space=vmem, size = 0x1000, scoped, tag = 'output window, operand 0, single buffered']
    #allocation3 [shape = 's32[1]{0}', space=sflag, size = 0x4, scoped, tag = 'scoped memory for tpu_custom_call.1']
    %12 = vsyncpa [#allocation3], 0
    // Predicated region
    $region2: #{tpu_custom_call.1} parent=1 // pred_check
      _
    $region3: #{tpu_custom_call.1} parent=1 // pred_check_branch
      %14 = sbr.rel (0) target = $region5
    $region4: #{tpu_custom_call.1} parent=1 // pred_region
      _
    $region5: #{tpu_custom_call.1} parent=1 // pred_fallthru
      _
    // Predicated region
    $region6: #{tpu_custom_call.1} parent=1 // pred_check
      _
    $region7: #{tpu_custom_call.1} parent=1 // pred_check_branch
      %16 = sbr.rel (0) target = $region9
    $region8: #{tpu_custom_call.1} parent=1 // pred_region
      _
    $region9: #{tpu_custom_call.1} parent=1 // pred_fallthru
      _
    // Predicated region
    $region10: #{tpu_custom_call.1} parent=1 // pred_check
      _
    $region11: #{tpu_custom_call.1} parent=1 // pred_check_branch
      %18 = sbr.rel (0) target = $region13
    $region12: #{tpu_custom_call.1} parent=1 // pred_region
      _
    $region13: #{tpu_custom_call.1} parent=1 // pred_fallthru
      _
    // Predicated region
    $region14: #{tpu_custom_call.1} parent=1 // pred_check
      _
    $region15: #{tpu_custom_call.1} parent=1 // pred_check_branch
      %20 = sbr.rel (0) target = $region17
    $region16: #{tpu_custom_call.1} parent=1 // pred_region
      _
    $region17: #{tpu_custom_call.1} parent=1 // pred_fallthru
      _
    // Predicated region
    $region18: #{tpu_custom_call.1} parent=1 // pred_check
      _
    $region19: #{tpu_custom_call.1} parent=1 // pred_check_branch
      %22 = sbr.rel (0) target = $region21
    $region20: #{tpu_custom_call.1} parent=1 // pred_region
      _
    $region21: #{tpu_custom_call.1} parent=1 // pred_fallthru
      _
    // Predicated region
    $region22: #{tpu_custom_call.1} parent=1 // pred_check
      _
    $region23: #{tpu_custom_call.1} parent=1 // pred_check_branch
      %24 = sbr.rel (0) target = $region25
    $region24: #{tpu_custom_call.1} parent=1 // pred_region
      _
    $region25: #{tpu_custom_call.1} parent=1 // pred_fallthru
      _
    // Predicated region
    $region26: #{tpu_custom_call.1} parent=1 // pred_check
      _
    $region27: #{tpu_custom_call.1} parent=1 // pred_check_branch
      %26 = sbr.rel (0) target = $region29
    $region28: #{tpu_custom_call.1} parent=1 // pred_region
      _
    $region29: #{tpu_custom_call.1} parent=1 // pred_fallthru
      _
    %v27 = vld [vmem:[%s1] sm:$0xff]
    %v28 = vld [vmem:[%s0] sm:$0xff]
    %v29 = vlaneseq
    %v30 = vand.u32 %v29, 127
    %31 = vset.pattern.permute.xlu0 0
    %32 = vperm.xlu0 %31, %v28
    %v33 = vpop.permute.xlu0 %32
    %vm34 = vcmp.eq.s32.totalorder %v30, %v33
    %v35 = vsel %vm34, 1, 0
    %v36 = vcvt.s32.f32 %v35
    %v37 = vld [vmem:[%s2] sm:$0xff]
    %v38 = vld [vmem:[%s2 + $0x8] sm:$0xff]
    %v39 = vld [vmem:[%s2 + $0x10] sm:$0xff]
    %v40 = vld [vmem:[%s2 + $0x18] sm:$0xff]
    %v41 = vld [vmem:[%s2 + $0x20] sm:$0xff]
    %v42 = vld [vmem:[%s2 + $0x28] sm:$0xff]
    %v43 = vld [vmem:[%s2 + $0x30] sm:$0xff]
    %v44 = vld [vmem:[%s2 + $0x38] sm:$0xff]
    %v45 = vld [vmem:[%s2 + $0x40] sm:$0xff]
    %v46 = vld [vmem:[%s2 + $0x48] sm:$0xff]
    %v47 = vld [vmem:[%s2 + $0x50] sm:$0xff]
    %v48 = vld [vmem:[%s2 + $0x58] sm:$0xff]
    %v49 = vld [vmem:[%s2 + $0x60] sm:$0xff]
    %v50 = vld [vmem:[%s2 + $0x68] sm:$0xff]
    %v51 = vld [vmem:[%s2 + $0x70] sm:$0xff]
    %v52 = vld [vmem:[%s2 + $0x78] sm:$0xff]
    %v53 = vld [vmem:[%s2 + $0x80] sm:$0xff]
    %v54 = vld [vmem:[%s2 + $0x88] sm:$0xff]
    %v55 = vld [vmem:[%s2 + $0x90] sm:$0xff]
    %v56 = vld [vmem:[%s2 + $0x98] sm:$0xff]
    %v57 = vld [vmem:[%s3] sm:$0xff]
    %v58 = vld [vmem:[%s3 + $0x8] sm:$0xff]
    %v59 = vld [vmem:[%s3 + $0x10] sm:$0xff]
    %v60 = vld [vmem:[%s3 + $0x18] sm:$0xff]
    %v61 = vld [vmem:[%s3 + $0x20] sm:$0xff]
    %vm62 = vcmask 64512
    %v64 = vsel %vm62, %v36, 0
    %66 = vmatprep.subr.mxu0 %v58
    %67 = vmatpush1.msra.mxu0 %v57
    %68 = vmatprep.subr.mxu0 0.0
    %69 = vmatpush1.msra.mxu0 0.0
    %70 = vmatprep.subr.mxu0 0.0
    %71 = vmatpush1.msra.mxu0 0.0
    %72 = vmatprep.subr.mxu0 0.0
    %73 = vmatpush1.msra.mxu0 0.0
    %74 = vmatprep.subr.mxu0 0.0
    %75 = vmatpush1.msra.mxu0 0.0
    %76 = vmatprep.subr.mxu0 0.0
    %77 = vmatpush1.msra.mxu0 0.0
    %78 = vmatprep.subr.mxu0 0.0
    %79 = vmatpush1.msra.mxu0 0.0
    %80 = vmatprep.subr.mxu0 0.0
    %81 = vmatpush1.msra.mxu0 0.0
    %82 = vmatprep.subr.mxu0 0.0
    %83 = vmatpush1.msra.mxu0 0.0
    %84 = vmatprep.subr.mxu0 0.0
    %85 = vmatpush1.msra.mxu0 0.0
    %86 = vmatprep.subr.mxu0 0.0
    %87 = vmatpush1.msra.mxu0 0.0
    %88 = vmatprep.subr.mxu0 0.0
    %89 = vmatpush1.msra.mxu0 0.0
    %90 = vmatprep.subr.mxu0 0.0
    %91 = vmatpush1.msra.mxu0 0.0
    %92 = vmatprep.subr.mxu0 0.0
    %93 = vmatpush1.msra.mxu0 0.0
    %94 = vmatprep.subr.mxu0 0.0
    %95 = vmatpush1.msra.mxu0 0.0
    %96 = vmatprep.subr.mxu0 0.0
    %97 = vmatpush1.msra.mxu0 0.0
    %98 = vmatprep.subr.mxu0 0.0
    %99 = vmatpush1.msra.mxu0 0.0
    %100 = vmatprep.subr.mxu0 0.0
    %101 = vmatpush1.msra.mxu0 0.0
    %102 = vmatprep.subr.mxu0 0.0
    %103 = vmatpush1.msra.mxu0 0.0
    %104 = vmatprep.subr.mxu0 0.0
    %105 = vmatpush1.msra.mxu0 0.0
    %106 = vmatprep.subr.mxu0 0.0
    %107 = vmatpush1.msra.mxu0 0.0
    %108 = vmatprep.subr.mxu0 0.0
    %109 = vmatpush1.msra.mxu0 0.0
    %110 = vmatprep.subr.mxu0 0.0
    %111 = vmatpush1.msra.mxu0 0.0
    %112 = vmatprep.subr.mxu0 0.0
    %113 = vmatpush1.msra.mxu0 0.0
    %114 = vmatprep.subr.mxu0 0.0
    %115 = vmatpush1.msra.mxu0 0.0
    %116 = vmatprep.subr.mxu0 0.0
    %117 = vmatpush1.msra.mxu0 0.0
    %118 = vmatprep.subr.mxu0 0.0
    %119 = vmatpush1.msra.mxu0 0.0
    %120 = vmatprep.subr.mxu0 0.0
    %121 = vmatpush1.msra.mxu0 0.0
    %122 = vmatprep.subr.mxu0 0.0
    %123 = vmatpush1.msra.mxu0 0.0
    %124 = vmatprep.subr.mxu0 0.0
    %125 = vmatpush1.msra.mxu0 0.0
    %126 = vmatprep.subr.mxu0 0.0
    %127 = vmatpush1.msra.mxu0 0.0
    %128 = vmatprep.subr.mxu0 0.0
    %129 = vmatpush1.msra.mxu0 0.0
    %130 = vmatprep.mubr.f32.mxu0 0.0
    %131 = vmatmul.mubr.f32.gmra.mrb[0].mxu0 %v64
    %v132 = vpop.f32.mrb[0].mxu0
    %v133 = vadd.f32 0.0, %v132
    %v134 = vpop.f32.mrb[0].mxu0
    %v135 = vadd.f32 0.0, %v134
    %136 = vdwg.mxu0
    %137 = vmatprep.subr.mxu0 %v60
    %138 = vmatpush1.msra.mxu0 %v59
    %139 = vmatprep.subr.mxu0 0.0
    %140 = vmatpush1.msra.mxu0 0.0
    %141 = vmatprep.subr.mxu0 0.0
    %142 = vmatpush1.msra.mxu0 0.0
    %143 = vmatprep.subr.mxu0 0.0
    %144 = vmatpush1.msra.mxu0 0.0
    %145 = vmatprep.subr.mxu0 0.0
    %146 = vmatpush1.msra.mxu0 0.0
    %147 = vmatprep.subr.mxu0 0.0
    %148 = vmatpush1.msra.mxu0 0.0
    %149 = vmatprep.subr.mxu0 0.0
    %150 = vmatpush1.msra.mxu0 0.0
    %151 = vmatprep.subr.mxu0 0.0
    %152 = vmatpush1.msra.mxu0 0.0
    %153 = vmatprep.subr.mxu0 0.0
    %154 = vmatpush1.msra.mxu0 0.0
    %155 = vmatprep.subr.mxu0 0.0
    %156 = vmatpush1.msra.mxu0 0.0
    %157 = vmatprep.subr.mxu0 0.0
    %158 = vmatpush1.msra.mxu0 0.0
    %159 = vmatprep.subr.mxu0 0.0
    %160 = vmatpush1.msra.mxu0 0.0
    %161 = vmatprep.subr.mxu0 0.0
    %162 = vmatpush1.msra.mxu0 0.0
    %163 = vmatprep.subr.mxu0 0.0
    %164 = vmatpush1.msra.mxu0 0.0
    %165 = vmatprep.subr.mxu0 0.0
    %166 = vmatpush1.msra.mxu0 0.0
    %167 = vmatprep.subr.mxu0 0.0
    %168 = vmatpush1.msra.mxu0 0.0
    %169 = vmatprep.subr.mxu0 0.0
    %170 = vmatpush1.msra.mxu0 0.0
    %171 = vmatprep.subr.mxu0 0.0
    %172 = vmatpush1.msra.mxu0 0.0
    %173 = vmatprep.subr.mxu0 0.0
    %174 = vmatpush1.msra.mxu0 0.0
    %175 = vmatprep.subr.mxu0 0.0
    %176 = vmatpush1.msra.mxu0 0.0
    %177 = vmatprep.subr.mxu0 0.0
    %178 = vmatpush1.msra.mxu0 0.0
    %179 = vmatprep.subr.mxu0 0.0
    %180 = vmatpush1.msra.mxu0 0.0
    %181 = vmatprep.subr.mxu0 0.0
    %182 = vmatpush1.msra.mxu0 0.0
    %183 = vmatprep.subr.mxu0 0.0
    %184 = vmatpush1.msra.mxu0 0.0
    %185 = vmatprep.subr.mxu0 0.0
    %186 = vmatpush1.msra.mxu0 0.0
    %187 = vmatprep.subr.mxu0 0.0
    %188 = vmatpush1.msra.mxu0 0.0
    %189 = vmatprep.subr.mxu0 0.0
    %190 = vmatpush1.msra.mxu0 0.0
    %191 = vmatprep.subr.mxu0 0.0
    %192 = vmatpush1.msra.mxu0 0.0
    %193 = vmatprep.subr.mxu0 0.0
    %194 = vmatpush1.msra.mxu0 0.0
    %195 = vmatprep.subr.mxu0 0.0
    %196 = vmatpush1.msra.mxu0 0.0
    %197 = vmatprep.subr.mxu0 0.0
    %198 = vmatpush1.msra.mxu0 0.0
    %199 = vmatprep.subr.mxu0 0.0
    %200 = vmatpush1.msra.mxu0 0.0
    %201 = vmatprep.mubr.f32.mxu0 0.0
    %202 = vmatmul.mubr.f32.gmra.mrb[0].mxu0 %v64
    %v203 = vpop.f32.mrb[0].mxu0
    %v204 = vadd.f32 0.0, %v203
    %v205 = vpop.f32.mrb[0].mxu0
    %v206 = vadd.f32 0.0, %v205
    %207 = vdwg.mxu0
    %208 = vmatprep.subr.mxu0 0.0
    %209 = vmatpush1.msra.mxu0 %v61
    %210 = vmatprep.subr.mxu0 0.0
    %211 = vmatpush1.msra.mxu0 0.0
    %212 = vmatprep.subr.mxu0 0.0
    %213 = vmatpush1.msra.mxu0 0.0
    %214 = vmatprep.subr.mxu0 0.0
    %215 = vmatpush1.msra.mxu0 0.0
    %216 = vmatprep.subr.mxu0 0.0
    %217 = vmatpush1.msra.mxu0 0.0
    %218 = vmatprep.subr.mxu0 0.0
    %219 = vmatpush1.msra.mxu0 0.0
    %220 = vmatprep.subr.mxu0 0.0
    %221 = vmatpush1.msra.mxu0 0.0
    %222 = vmatprep.subr.mxu0 0.0
    %223 = vmatpush1.msra.mxu0 0.0
    %224 = vmatprep.subr.mxu0 0.0
    %225 = vmatpush1.msra.mxu0 0.0
    %226 = vmatprep.subr.mxu0 0.0
    %227 = vmatpush1.msra.mxu0 0.0
    %228 = vmatprep.subr.mxu0 0.0
    %229 = vmatpush1.msra.mxu0 0.0
    %230 = vmatprep.subr.mxu0 0.0
    %231 = vmatpush1.msra.mxu0 0.0
    %232 = vmatprep.subr.mxu0 0.0
    %233 = vmatpush1.msra.mxu0 0.0
    %234 = vmatprep.subr.mxu0 0.0
    %235 = vmatpush1.msra.mxu0 0.0
    %236 = vmatprep.subr.mxu0 0.0
    %237 = vmatpush1.msra.mxu0 0.0
    %238 = vmatprep.subr.mxu0 0.0
    %239 = vmatpush1.msra.mxu0 0.0
    %240 = vmatprep.subr.mxu0 0.0
    %241 = vmatpush1.msra.mxu0 0.0
    %242 = vmatprep.subr.mxu0 0.0
    %243 = vmatpush1.msra.mxu0 0.0
    %244 = vmatprep.subr.mxu0 0.0
    %245 = vmatpush1.msra.mxu0 0.0
    %246 = vmatprep.subr.mxu0 0.0
    %247 = vmatpush1.msra.mxu0 0.0
    %248 = vmatprep.subr.mxu0 0.0
    %249 = vmatpush1.msra.mxu0 0.0
    %250 = vmatprep.subr.mxu0 0.0
    %251 = vmatpush1.msra.mxu0 0.0
    %252 = vmatprep.subr.mxu0 0.0
    %253 = vmatpush1.msra.mxu0 0.0
    %254 = vmatprep.subr.mxu0 0.0
    %255 = vmatpush1.msra.mxu0 0.0
    %256 = vmatprep.subr.mxu0 0.0
    %257 = vmatpush1.msra.mxu0 0.0
    %258 = vmatprep.subr.mxu0 0.0
    %259 = vmatpush1.msra.mxu0 0.0
    %260 = vmatprep.subr.mxu0 0.0
    %261 = vmatpush1.msra.mxu0 0.0
    %262 = vmatprep.subr.mxu0 0.0
    %263 = vmatpush1.msra.mxu0 0.0
    %264 = vmatprep.subr.mxu0 0.0
    %265 = vmatpush1.msra.mxu0 0.0
    %266 = vmatprep.subr.mxu0 0.0
    %267 = vmatpush1.msra.mxu0 0.0
    %268 = vmatprep.subr.mxu0 0.0
    %269 = vmatpush1.msra.mxu0 0.0
    %270 = vmatprep.subr.mxu0 0.0
    %271 = vmatpush1.msra.mxu0 0.0
    %272 = vmatprep.mubr.f32.mxu0 0.0
    %273 = vmatmul.mubr.f32.gmra.mrb[0].mxu0 %v64
    %v274 = vpop.f32.mrb[0].mxu0
    %v275 = vadd.f32 0.0, %v274
    %v276 = vpop.f32.mrb[0].mxu0
    %277 = vdwg.mxu0
    %vm278 = vcmask 261120
    %v280 = vsel %vm278, %v27, 0
    %282 = vmatprep.subr.mxu0 %v38
    %283 = vmatpush1.msra.mxu0 %v37
    %284 = vmatprep.subr.mxu0 %v43
    %285 = vmatpush1.msra.mxu0 %v42
    %286 = vmatprep.subr.mxu0 %v48
    %287 = vmatpush1.msra.mxu0 %v47
    %288 = vmatprep.subr.mxu0 %v53
    %289 = vmatpush1.msra.mxu0 %v52
    %290 = vmatprep.subr.mxu0 0.0
    %291 = vmatpush1.msra.mxu0 0.0
    %292 = vmatprep.subr.mxu0 0.0
    %293 = vmatpush1.msra.mxu0 0.0
    %294 = vmatprep.subr.mxu0 0.0
    %295 = vmatpush1.msra.mxu0 0.0
    %296 = vmatprep.subr.mxu0 0.0
    %297 = vmatpush1.msra.mxu0 0.0
    %298 = vmatprep.subr.mxu0 0.0
    %299 = vmatpush1.msra.mxu0 0.0
    %300 = vmatprep.subr.mxu0 0.0
    %301 = vmatpush1.msra.mxu0 0.0
    %302 = vmatprep.subr.mxu0 0.0
    %303 = vmatpush1.msra.mxu0 0.0
    %304 = vmatprep.subr.mxu0 0.0
    %305 = vmatpush1.msra.mxu0 0.0
    %306 = vmatprep.subr.mxu0 0.0
    %307 = vmatpush1.msra.mxu0 0.0
    %308 = vmatprep.subr.mxu0 0.0
    %309 = vmatpush1.msra.mxu0 0.0
    %310 = vmatprep.subr.mxu0 0.0
    %311 = vmatpush1.msra.mxu0 0.0
    %312 = vmatprep.subr.mxu0 0.0
    %313 = vmatpush1.msra.mxu0 0.0
    %314 = vmatprep.subr.mxu0 0.0
    %315 = vmatpush1.msra.mxu0 0.0
    %316 = vmatprep.subr.mxu0 0.0
    %317 = vmatpush1.msra.mxu0 0.0
    %318 = vmatprep.subr.mxu0 0.0
    %319 = vmatpush1.msra.mxu0 0.0
    %320 = vmatprep.subr.mxu0 0.0
    %321 = vmatpush1.msra.mxu0 0.0
    %322 = vmatprep.subr.mxu0 0.0
    %323 = vmatpush1.msra.mxu0 0.0
    %324 = vmatprep.subr.mxu0 0.0
    %325 = vmatpush1.msra.mxu0 0.0
    %326 = vmatprep.subr.mxu0 0.0
    %327 = vmatpush1.msra.mxu0 0.0
    %328 = vmatprep.subr.mxu0 0.0
    %329 = vmatpush1.msra.mxu0 0.0
    %330 = vmatprep.subr.mxu0 0.0
    %331 = vmatpush1.msra.mxu0 0.0
    %332 = vmatprep.subr.mxu0 0.0
    %333 = vmatpush1.msra.mxu0 0.0
    %334 = vmatprep.subr.mxu0 0.0
    %335 = vmatpush1.msra.mxu0 0.0
    %336 = vmatprep.subr.mxu0 0.0
    %337 = vmatpush1.msra.mxu0 0.0
    %338 = vmatprep.subr.mxu0 0.0
    %339 = vmatpush1.msra.mxu0 0.0
    %340 = vmatprep.subr.mxu0 0.0
    %341 = vmatpush1.msra.mxu0 0.0
    %342 = vmatprep.subr.mxu0 0.0
    %343 = vmatpush1.msra.mxu0 0.0
    %344 = vmatprep.subr.mxu0 0.0
    %345 = vmatpush1.msra.mxu0 0.0
    %346 = vmatprep.mubr.f32.mxu0 0.0
    %347 = vmatmul.mubr.f32.gmra.mrb[0].mxu0 %v280
    %v348 = vpop.f32.mrb[0].mxu0
    %v349 = vadd.f32 %v133, %v348
    %v350 = vpop.f32.mrb[0].mxu0
    %v351 = vadd.f32 %v135, %v350
    %352 = vdwg.mxu0
    %353 = vmatprep.subr.mxu0 %v40
    %354 = vmatpush1.msra.mxu0 %v39
    %355 = vmatprep.subr.mxu0 %v45
    %356 = vmatpush1.msra.mxu0 %v44
    %357 = vmatprep.subr.mxu0 %v50
    %358 = vmatpush1.msra.mxu0 %v49
    %359 = vmatprep.subr.mxu0 %v55
    %360 = vmatpush1.msra.mxu0 %v54
    %361 = vmatprep.subr.mxu0 0.0
    %362 = vmatpush1.msra.mxu0 0.0
    %363 = vmatprep.subr.mxu0 0.0
    %364 = vmatpush1.msra.mxu0 0.0
    %365 = vmatprep.subr.mxu0 0.0
    %366 = vmatpush1.msra.mxu0 0.0
    %367 = vmatprep.subr.mxu0 0.0
    %368 = vmatpush1.msra.mxu0 0.0
    %369 = vmatprep.subr.mxu0 0.0
    %370 = vmatpush1.msra.mxu0 0.0
    %371 = vmatprep.subr.mxu0 0.0
    %372 = vmatpush1.msra.mxu0 0.0
    %373 = vmatprep.subr.mxu0 0.0
    %374 = vmatpush1.msra.mxu0 0.0
    %375 = vmatprep.subr.mxu0 0.0
    %376 = vmatpush1.msra.mxu0 0.0
    %377 = vmatprep.subr.mxu0 0.0
    %378 = vmatpush1.msra.mxu0 0.0
    %379 = vmatprep.subr.mxu0 0.0
    %380 = vmatpush1.msra.mxu0 0.0
    %381 = vmatprep.subr.mxu0 0.0
    %382 = vmatpush1.msra.mxu0 0.0
    %383 = vmatprep.subr.mxu0 0.0
    %384 = vmatpush1.msra.mxu0 0.0
    %385 = vmatprep.subr.mxu0 0.0
    %386 = vmatpush1.msra.mxu0 0.0
    %387 = vmatprep.subr.mxu0 0.0
    %388 = vmatpush1.msra.mxu0 0.0
    %389 = vmatprep.subr.mxu0 0.0
    %390 = vmatpush1.msra.mxu0 0.0
    %391 = vmatprep.subr.mxu0 0.0
    %392 = vmatpush1.msra.mxu0 0.0
    %393 = vmatprep.subr.mxu0 0.0
    %394 = vmatpush1.msra.mxu0 0.0
    %395 = vmatprep.subr.mxu0 0.0
    %396 = vmatpush1.msra.mxu0 0.0
    %397 = vmatprep.subr.mxu0 0.0
    %398 = vmatpush1.msra.mxu0 0.0
    %399 = vmatprep.subr.mxu0 0.0
    %400 = vmatpush1.msra.mxu0 0.0
    %401 = vmatprep.subr.mxu0 0.0
    %402 = vmatpush1.msra.mxu0 0.0
    %403 = vmatprep.subr.mxu0 0.0
    %404 = vmatpush1.msra.mxu0 0.0
    %405 = vmatprep.subr.mxu0 0.0
    %406 = vmatpush1.msra.mxu0 0.0
    %407 = vmatprep.subr.mxu0 0.0
    %408 = vmatpush1.msra.mxu0 0.0
    %409 = vmatprep.subr.mxu0 0.0
    %410 = vmatpush1.msra.mxu0 0.0
    %411 = vmatprep.subr.mxu0 0.0
    %412 = vmatpush1.msra.mxu0 0.0
    %413 = vmatprep.subr.mxu0 0.0
    %414 = vmatpush1.msra.mxu0 0.0
    %415 = vmatprep.subr.mxu0 0.0
    %416 = vmatpush1.msra.mxu0 0.0
    %417 = vmatprep.mubr.f32.mxu0 0.0
    %418 = vmatmul.mubr.f32.gmra.mrb[0].mxu0 %v280
    %v419 = vpop.f32.mrb[0].mxu0
    %v420 = vadd.f32 %v204, %v419
    %v421 = vpop.f32.mrb[0].mxu0
    %v422 = vadd.f32 %v206, %v421
    %423 = vdwg.mxu0
    %424 = vmatprep.subr.mxu0 0.0
    %425 = vmatpush1.msra.mxu0 %v41
    %426 = vmatprep.subr.mxu0 0.0
    %427 = vmatpush1.msra.mxu0 %v46
    %428 = vmatprep.subr.mxu0 0.0
    %429 = vmatpush1.msra.mxu0 %v51
    %430 = vmatprep.subr.mxu0 0.0
    %431 = vmatpush1.msra.mxu0 %v56
    %432 = vmatprep.subr.mxu0 0.0
    %433 = vmatpush1.msra.mxu0 0.0
    %434 = vmatprep.subr.mxu0 0.0
    %435 = vmatpush1.msra.mxu0 0.0
    %436 = vmatprep.subr.mxu0 0.0
    %437 = vmatpush1.msra.mxu0 0.0
    %438 = vmatprep.subr.mxu0 0.0
    %439 = vmatpush1.msra.mxu0 0.0
    %440 = vmatprep.subr.mxu0 0.0
    %441 = vmatpush1.msra.mxu0 0.0
    %442 = vmatprep.subr.mxu0 0.0
    %443 = vmatpush1.msra.mxu0 0.0
    %444 = vmatprep.subr.mxu0 0.0
    %445 = vmatpush1.msra.mxu0 0.0
    %446 = vmatprep.subr.mxu0 0.0
    %447 = vmatpush1.msra.mxu0 0.0
    %448 = vmatprep.subr.mxu0 0.0
    %449 = vmatpush1.msra.mxu0 0.0
    %450 = vmatprep.subr.mxu0 0.0
    %451 = vmatpush1.msra.mxu0 0.0
    %452 = vmatprep.subr.mxu0 0.0
    %453 = vmatpush1.msra.mxu0 0.0
    %454 = vmatprep.subr.mxu0 0.0
    %455 = vmatpush1.msra.mxu0 0.0
    %456 = vmatprep.subr.mxu0 0.0
    %457 = vmatpush1.msra.mxu0 0.0
    %458 = vmatprep.subr.mxu0 0.0
    %459 = vmatpush1.msra.mxu0 0.0
    %460 = vmatprep.subr.mxu0 0.0
    %461 = vmatpush1.msra.mxu0 0.0
    %462 = vmatprep.subr.mxu0 0.0
    %463 = vmatpush1.msra.mxu0 0.0
    %464 = vmatprep.subr.mxu0 0.0
    %465 = vmatpush1.msra.mxu0 0.0
    %466 = vmatprep.subr.mxu0 0.0
    %467 = vmatpush1.msra.mxu0 0.0
    %468 = vmatprep.subr.mxu0 0.0
    %469 = vmatpush1.msra.mxu0 0.0
    %470 = vmatprep.subr.mxu0 0.0
    %471 = vmatpush1.msra.mxu0 0.0
    %472 = vmatprep.subr.mxu0 0.0
    %473 = vmatpush1.msra.mxu0 0.0
    %474 = vmatprep.subr.mxu0 0.0
    %475 = vmatpush1.msra.mxu0 0.0
    %476 = vmatprep.subr.mxu0 0.0
    %477 = vmatpush1.msra.mxu0 0.0
    %478 = vmatprep.subr.mxu0 0.0
    %479 = vmatpush1.msra.mxu0 0.0
    %480 = vmatprep.subr.mxu0 0.0
    %481 = vmatpush1.msra.mxu0 0.0
    %482 = vmatprep.subr.mxu0 0.0
    %483 = vmatpush1.msra.mxu0 0.0
    %484 = vmatprep.subr.mxu0 0.0
    %485 = vmatpush1.msra.mxu0 0.0
    %486 = vmatprep.subr.mxu0 0.0
    %487 = vmatpush1.msra.mxu0 0.0
    %488 = vmatprep.mubr.f32.mxu0 0.0
    %489 = vmatmul.mubr.f32.gmra.mrb[0].mxu0 %v280
    %v490 = vpop.f32.mrb[0].mxu0
    %v491 = vadd.f32 %v275, %v490
    %v492 = vpop.f32.mrb[0].mxu0
    %493 = vdwg.mxu0
    %v494 = vld [vmem:[%s4] sm:$0x1f]
    %v496 = vlaneseq
    %v497 = vshrl.u32 %v496, 7
    %v498 = vsub.s32 0, %v497
    %v499 = vrot.slane %v494, %v498
    %v500 = vlaneseq
    %v501 = vshrl.u32 %v500, 7
    %v502 = vsub.s32 1, %v501
    %v503 = vrot.slane %v494, %v502
    %v504 = vlaneseq
    %v505 = vshrl.u32 %v504, 7
    %v506 = vsub.s32 2, %v505
    %v507 = vrot.slane %v494, %v506
    %v508 = vlaneseq
    %v509 = vshrl.u32 %v508, 7
    %v510 = vsub.s32 3, %v509
    %v511 = vrot.slane %v494, %v510
    %v512 = vlaneseq
    %v513 = vshrl.u32 %v512, 7
    %v514 = vsub.s32 4, %v513
    %v515 = vrot.slane %v494, %v514
    %v521 = vadd.f32 %v349, %v499
    %v522 = vadd.f32 %v351, %v503
    %v523 = vadd.f32 %v420, %v507
    %v524 = vadd.f32 %v422, %v511
    %v525 = vadd.f32 %v491, %v515
    %v526 = vadd.s32 %v30, 128
    %v527 = vadd.s32 %v30, 256
    %v528 = vadd.s32 %v30, 384
    %v529 = vadd.s32 %v30, 512
    %vm530 = vcmp.lt.s32.totalorder %v30, 32
    %vm531 = vcmp.lt.s32.totalorder %v526, 32
    %vm532 = vcmp.lt.s32.totalorder %v527, 32
    %vm533 = vcmp.lt.s32.totalorder %v528, 32
    %vm534 = vcmp.lt.s32.totalorder %v529, 32
    %v535 = vxor.u32 %v521, 2147483648
    %v536 = vxor.u32 %v522, 2147483648
    %v537 = vxor.u32 %v523, 2147483648
    %v538 = vxor.u32 %v524, 2147483648
    %v539 = vxor.u32 %v525, 2147483648
    %v540 = vmul.f32 %v535, 1.442695
    %v541 = vpow.pop %v540
    %v542 = vmul.f32 %v536, 1.442695
    %v543 = vpow.pop %v542
    %v544 = vmul.f32 %v537, 1.442695
    %v545 = vpow.pop %v544
    %v546 = vmul.f32 %v538, 1.442695
    %v547 = vpow.pop %v546
    %v548 = vmul.f32 %v539, 1.442695
    %v549 = vpow.pop %v548
    %v550 = vadd.f32 %v541, 1.0
    %v551 = vadd.f32 %v543, 1.0
    %v552 = vadd.f32 %v545, 1.0
    %v553 = vadd.f32 %v547, 1.0
    %v554 = vadd.f32 %v549, 1.0
    %v555 = vrcp.pop %v550
    %v556 = vmul.f32 1.0, %v555
    %v557 = vrcp.pop %v551
    %v558 = vmul.f32 1.0, %v557
    %v559 = vrcp.pop %v552
    %v560 = vmul.f32 1.0, %v559
    %v561 = vrcp.pop %v553
    %v562 = vmul.f32 1.0, %v561
    %v563 = vrcp.pop %v554
    %v564 = vmul.f32 1.0, %v563
    %v565 = vmul.f32 %v521, %v556
    %v566 = vmul.f32 %v522, %v558
    %v567 = vmul.f32 %v523, %v560
    %v568 = vmul.f32 %v524, %v562
    %v569 = vmul.f32 %v525, %v564
    %v570 = vsel %vm530, %v565, %v521
    %v571 = vsel %vm531, %v566, %v522
    %v572 = vsel %vm532, %v567, %v523
    %v573 = vsel %vm533, %v568, %v524
    %v574 = vsel %vm534, %v569, %v525
    %v575 = vld [vmem:[%s5] sm:$0xff]
    %v576 = vld [vmem:[%s5 + $0x8] sm:$0xff]
    %v577 = vld [vmem:[%s5 + $0x10] sm:$0xff]
    %v578 = vld [vmem:[%s5 + $0x18] sm:$0xff]
    %v579 = vld [vmem:[%s5 + $0x20] sm:$0xff]
    %v580 = vld [vmem:[%s5 + $0x28] sm:$0xff]
    %v581 = vld [vmem:[%s5 + $0x30] sm:$0xff]
    %v582 = vld [vmem:[%s5 + $0x38] sm:$0xff]
    %v583 = vld [vmem:[%s5 + $0x40] sm:$0xff]
    %v584 = vld [vmem:[%s5 + $0x48] sm:$0xff]
    %v585 = vld [vmem:[%s5 + $0x50] sm:$0xff]
    %v586 = vld [vmem:[%s5 + $0x58] sm:$0xff]
    %v587 = vld [vmem:[%s5 + $0x60] sm:$0xff]
    %v588 = vld [vmem:[%s5 + $0x68] sm:$0xff]
    %v589 = vld [vmem:[%s5 + $0x70] sm:$0xff]
    %v590 = vld [vmem:[%s5 + $0x78] sm:$0xff]
    %v591 = vld [vmem:[%s5 + $0x80] sm:$0xff]
    %v592 = vld [vmem:[%s5 + $0x88] sm:$0xff]
    %v593 = vld [vmem:[%s5 + $0x90] sm:$0xff]
    %v594 = vld [vmem:[%s5 + $0x98] sm:$0xff]
    %v595 = vld [vmem:[%s5 + $0xa0] sm:$0xff]
    %v596 = vld [vmem:[%s5 + $0xa8] sm:$0xff]
    %v597 = vld [vmem:[%s5 + $0xb0] sm:$0xff]
    %v598 = vld [vmem:[%s5 + $0xb8] sm:$0xff]
    %v599 = vld [vmem:[%s5 + $0xc0] sm:$0xff]
    %v600 = vld [vmem:[%s5 + $0xc8] sm:$0xff]
    %v601 = vld [vmem:[%s5 + $0xd0] sm:$0xff]
    %v602 = vld [vmem:[%s5 + $0xd8] sm:$0xff]
    %v603 = vld [vmem:[%s5 + $0xe0] sm:$0xff]
    %v604 = vld [vmem:[%s5 + $0xe8] sm:$0xff]
    %v605 = vld [vmem:[%s5 + $0xf0] sm:$0xff]
    %v606 = vld [vmem:[%s5 + $0xf8] sm:$0xff]
    %v607 = vld [vmem:[%s5 + $0x100] sm:$0xff]
    %v608 = vld [vmem:[%s5 + $0x108] sm:$0xff]
    %v609 = vld [vmem:[%s5 + $0x110] sm:$0xff]
    %v610 = vld [vmem:[%s5 + $0x118] sm:$0xff]
    %v611 = vld [vmem:[%s5 + $0x120] sm:$0xff]
    %v612 = vld [vmem:[%s5 + $0x128] sm:$0xff]
    %v613 = vld [vmem:[%s5 + $0x130] sm:$0xff]
    %v614 = vld [vmem:[%s5 + $0x138] sm:$0xff]
    %v615 = vld [vmem:[%s5 + $0x140] sm:$0xff]
    %v616 = vld [vmem:[%s5 + $0x148] sm:$0xff]
    %v617 = vld [vmem:[%s5 + $0x150] sm:$0xff]
    %v618 = vld [vmem:[%s5 + $0x158] sm:$0xff]
    %v619 = vld [vmem:[%s5 + $0x160] sm:$0xff]
    %v620 = vld [vmem:[%s5 + $0x168] sm:$0xff]
    %v621 = vld [vmem:[%s5 + $0x170] sm:$0xff]
    %v622 = vld [vmem:[%s5 + $0x178] sm:$0xff]
    %v623 = vld [vmem:[%s5 + $0x180] sm:$0xff]
    %v624 = vld [vmem:[%s5 + $0x188] sm:$0xff]
    %v625 = vld [vmem:[%s5 + $0x190] sm:$0xff]
    %v626 = vld [vmem:[%s5 + $0x198] sm:$0xff]
    %v627 = vld [vmem:[%s5 + $0x1a0] sm:$0xff]
    %v628 = vld [vmem:[%s5 + $0x1a8] sm:$0xff]
    %v629 = vld [vmem:[%s5 + $0x1b0] sm:$0xff]
    %v630 = vld [vmem:[%s5 + $0x1b8] sm:$0xff]
    %v631 = vld [vmem:[%s5 + $0x1c0] sm:$0xff]
    %v632 = vld [vmem:[%s5 + $0x1c8] sm:$0xff]
    %v633 = vld [vmem:[%s5 + $0x1d0] sm:$0xff]
    %v634 = vld [vmem:[%s5 + $0x1d8] sm:$0xff]
    %v635 = vld [vmem:[%s5 + $0x1e0] sm:$0xff]
    %v636 = vld [vmem:[%s5 + $0x1e8] sm:$0xff]
    %v637 = vld [vmem:[%s5 + $0x1f0] sm:$0xff]
    %v638 = vld [vmem:[%s5 + $0x1f8] sm:$0xff]
    %v639 = vld [vmem:[%s5 + $0x200] sm:$0xff]
    %v640 = vld [vmem:[%s5 + $0x208] sm:$0xff]
    %v641 = vld [vmem:[%s5 + $0x210] sm:$0xff]
    %v642 = vld [vmem:[%s5 + $0x218] sm:$0xff]
    %v643 = vld [vmem:[%s6] sm:$0x1]
    %v645 = vlaneseq
    %v646 = vshrl.u32 %v645, 7
    %v647 = vsub.s32 0, %v646
    %v648 = vrot.slane %v643, %v647
    %v651 = vsel %vm278, %v574, 0
    %653 = vmatprep.subr.mxu0 0.0
    %654 = vmatpush1.msra.mxu0 %v575
    %655 = vmatprep.subr.mxu0 0.0
    %656 = vmatpush1.msra.mxu0 %v576
    %657 = vmatprep.subr.mxu0 0.0
    %658 = vmatpush1.msra.mxu0 %v577
    %659 = vmatprep.subr.mxu0 0.0
    %660 = vmatpush1.msra.mxu0 %v578
    %661 = vmatprep.subr.mxu0 0.0
    %662 = vmatpush1.msra.mxu0 %v579
    %663 = vmatprep.subr.mxu0 0.0
    %664 = vmatpush1.msra.mxu0 %v580
    %665 = vmatprep.subr.mxu0 0.0
    %666 = vmatpush1.msra.mxu0 %v581
    %667 = vmatprep.subr.mxu0 0.0
    %668 = vmatpush1.msra.mxu0 %v582
    %669 = vmatprep.subr.mxu0 0.0
    %670 = vmatpush1.msra.mxu0 %v583
    %671 = vmatprep.subr.mxu0 0.0
    %672 = vmatpush1.msra.mxu0 %v584
    %673 = vmatprep.subr.mxu0 0.0
    %674 = vmatpush1.msra.mxu0 %v585
    %675 = vmatprep.subr.mxu0 0.0
    %676 = vmatpush1.msra.mxu0 %v586
    %677 = vmatprep.subr.mxu0 0.0
    %678 = vmatpush1.msra.mxu0 %v587
    %679 = vmatprep.subr.mxu0 0.0
    %680 = vmatpush1.msra.mxu0 %v588
    %681 = vmatprep.subr.mxu0 0.0
    %682 = vmatpush1.msra.mxu0 %v589
    %683 = vmatprep.subr.mxu0 0.0
    %684 = vmatpush1.msra.mxu0 %v590
    %685 = vmatprep.subr.mxu0 0.0
    %686 = vmatpush1.msra.mxu0 %v591
    %687 = vmatprep.subr.mxu0 0.0
    %688 = vmatpush1.msra.mxu0 %v592
    %689 = vmatprep.subr.mxu0 0.0
    %690 = vmatpush1.msra.mxu0 %v593
    %691 = vmatprep.subr.mxu0 0.0
    %692 = vmatpush1.msra.mxu0 %v594
    %693 = vmatprep.subr.mxu0 0.0
    %694 = vmatpush1.msra.mxu0 %v595
    %695 = vmatprep.subr.mxu0 0.0
    %696 = vmatpush1.msra.mxu0 %v596
    %697 = vmatprep.subr.mxu0 0.0
    %698 = vmatpush1.msra.mxu0 %v597
    %699 = vmatprep.subr.mxu0 0.0
    %700 = vmatpush1.msra.mxu0 %v598
    %701 = vmatprep.subr.mxu0 0.0
    %702 = vmatpush1.msra.mxu0 %v599
    %703 = vmatprep.subr.mxu0 0.0
    %704 = vmatpush1.msra.mxu0 %v600
    %705 = vmatprep.subr.mxu0 0.0
    %706 = vmatpush1.msra.mxu0 %v601
    %707 = vmatprep.subr.mxu0 0.0
    %708 = vmatpush1.msra.mxu0 %v602
    %709 = vmatprep.subr.mxu0 0.0
    %710 = vmatpush1.msra.mxu0 %v603
    %711 = vmatprep.subr.mxu0 0.0
    %712 = vmatpush1.msra.mxu0 %v604
    %713 = vmatprep.subr.mxu0 0.0
    %714 = vmatpush1.msra.mxu0 %v605
    %715 = vmatprep.subr.mxu0 0.0
    %716 = vmatpush1.msra.mxu0 %v606
    %717 = vmatprep.mubr.f32.mxu0 %v571
    %718 = vmatmul.mubr.f32.gmra.mrb[0].mxu0 %v570
    %v719 = vpop.f32.mrb[0].mxu0
    %v720 = vadd.f32 %v648, %v719
    %v721 = vpop.f32.mrb[0].mxu0
    %722 = vdwg.mxu0
    %723 = vmatprep.subr.mxu0 0.0
    %724 = vmatpush1.msra.mxu0 %v607
    %725 = vmatprep.subr.mxu0 0.0
    %726 = vmatpush1.msra.mxu0 %v608
    %727 = vmatprep.subr.mxu0 0.0
    %728 = vmatpush1.msra.mxu0 %v609
    %729 = vmatprep.subr.mxu0 0.0
    %730 = vmatpush1.msra.mxu0 %v610
    %731 = vmatprep.subr.mxu0 0.0
    %732 = vmatpush1.msra.mxu0 %v611
    %733 = vmatprep.subr.mxu0 0.0
    %734 = vmatpush1.msra.mxu0 %v612
    %735 = vmatprep.subr.mxu0 0.0
    %736 = vmatpush1.msra.mxu0 %v613
    %737 = vmatprep.subr.mxu0 0.0
    %738 = vmatpush1.msra.mxu0 %v614
    %739 = vmatprep.subr.mxu0 0.0
    %740 = vmatpush1.msra.mxu0 %v615
    %741 = vmatprep.subr.mxu0 0.0
    %742 = vmatpush1.msra.mxu0 %v616
    %743 = vmatprep.subr.mxu0 0.0
    %744 = vmatpush1.msra.mxu0 %v617
    %745 = vmatprep.subr.mxu0 0.0
    %746 = vmatpush1.msra.mxu0 %v618
    %747 = vmatprep.subr.mxu0 0.0
    %748 = vmatpush1.msra.mxu0 %v619
    %749 = vmatprep.subr.mxu0 0.0
    %750 = vmatpush1.msra.mxu0 %v620
    %751 = vmatprep.subr.mxu0 0.0
    %752 = vmatpush1.msra.mxu0 %v621
    %753 = vmatprep.subr.mxu0 0.0
    %754 = vmatpush1.msra.mxu0 %v622
    %755 = vmatprep.subr.mxu0 0.0
    %756 = vmatpush1.msra.mxu0 %v623
    %757 = vmatprep.subr.mxu0 0.0
    %758 = vmatpush1.msra.mxu0 %v624
    %759 = vmatprep.subr.mxu0 0.0
    %760 = vmatpush1.msra.mxu0 %v625
    %761 = vmatprep.subr.mxu0 0.0
    %762 = vmatpush1.msra.mxu0 %v626
    %763 = vmatprep.subr.mxu0 0.0
    %764 = vmatpush1.msra.mxu0 %v627
    %765 = vmatprep.subr.mxu0 0.0
    %766 = vmatpush1.msra.mxu0 %v628
    %767 = vmatprep.subr.mxu0 0.0
    %768 = vmatpush1.msra.mxu0 %v629
    %769 = vmatprep.subr.mxu0 0.0
    %770 = vmatpush1.msra.mxu0 %v630
    %771 = vmatprep.subr.mxu0 0.0
    %772 = vmatpush1.msra.mxu0 %v631
    %773 = vmatprep.subr.mxu0 0.0
    %774 = vmatpush1.msra.mxu0 %v632
    %775 = vmatprep.subr.mxu0 0.0
    %776 = vmatpush1.msra.mxu0 %v633
    %777 = vmatprep.subr.mxu0 0.0
    %778 = vmatpush1.msra.mxu0 %v634
    %779 = vmatprep.subr.mxu0 0.0
    %780 = vmatpush1.msra.mxu0 %v635
    %781 = vmatprep.subr.mxu0 0.0
    %782 = vmatpush1.msra.mxu0 %v636
    %783 = vmatprep.subr.mxu0 0.0
    %784 = vmatpush1.msra.mxu0 %v637
    %785 = vmatprep.subr.mxu0 0.0
    %786 = vmatpush1.msra.mxu0 %v638
    %787 = vmatprep.mubr.f32.mxu0 %v573
    %788 = vmatmul.mubr.f32.gmra.mrb[0].mxu0 %v572
    %v789 = vpop.f32.mrb[0].mxu0
    %v790 = vadd.f32 %v720, %v789
    %v791 = vpop.f32.mrb[0].mxu0
    %792 = vdwg.mxu0
    %793 = vmatprep.subr.mxu0 0.0
    %794 = vmatpush1.msra.mxu0 %v639
    %795 = vmatprep.subr.mxu0 0.0
    %796 = vmatpush1.msra.mxu0 %v640
    %797 = vmatprep.subr.mxu0 0.0
    %798 = vmatpush1.msra.mxu0 %v641
    %799 = vmatprep.subr.mxu0 0.0
    %800 = vmatpush1.msra.mxu0 %v642
    %801 = vmatprep.subr.mxu0 0.0
    %802 = vmatpush1.msra.mxu0 0.0
    %803 = vmatprep.subr.mxu0 0.0
    %804 = vmatpush1.msra.mxu0 0.0
    %805 = vmatprep.subr.mxu0 0.0
    %806 = vmatpush1.msra.mxu0 0.0
    %807 = vmatprep.subr.mxu0 0.0
    %808 = vmatpush1.msra.mxu0 0.0
    %809 = vmatprep.subr.mxu0 0.0
    %810 = vmatpush1.msra.mxu0 0.0
    %811 = vmatprep.subr.mxu0 0.0
    %812 = vmatpush1.msra.mxu0 0.0
    %813 = vmatprep.subr.mxu0 0.0
    %814 = vmatpush1.msra.mxu0 0.0
    %815 = vmatprep.subr.mxu0 0.0
    %816 = vmatpush1.msra.mxu0 0.0
    %817 = vmatprep.subr.mxu0 0.0
    %818 = vmatpush1.msra.mxu0 0.0
    %819 = vmatprep.subr.mxu0 0.0
    %820 = vmatpush1.msra.mxu0 0.0
    %821 = vmatprep.subr.mxu0 0.0
    %822 = vmatpush1.msra.mxu0 0.0
    %823 = vmatprep.subr.mxu0 0.0
    %824 = vmatpush1.msra.mxu0 0.0
    %825 = vmatprep.subr.mxu0 0.0
    %826 = vmatpush1.msra.mxu0 0.0
    %827 = vmatprep.subr.mxu0 0.0
    %828 = vmatpush1.msra.mxu0 0.0
    %829 = vmatprep.subr.mxu0 0.0
    %830 = vmatpush1.msra.mxu0 0.0
    %831 = vmatprep.subr.mxu0 0.0
    %832 = vmatpush1.msra.mxu0 0.0
    %833 = vmatprep.subr.mxu0 0.0
    %834 = vmatpush1.msra.mxu0 0.0
    %835 = vmatprep.subr.mxu0 0.0
    %836 = vmatpush1.msra.mxu0 0.0
    %837 = vmatprep.subr.mxu0 0.0
    %838 = vmatpush1.msra.mxu0 0.0
    %839 = vmatprep.subr.mxu0 0.0
    %840 = vmatpush1.msra.mxu0 0.0
    %841 = vmatprep.subr.mxu0 0.0
    %842 = vmatpush1.msra.mxu0 0.0
    %843 = vmatprep.subr.mxu0 0.0
    %844 = vmatpush1.msra.mxu0 0.0
    %845 = vmatprep.subr.mxu0 0.0
    %846 = vmatpush1.msra.mxu0 0.0
    %847 = vmatprep.subr.mxu0 0.0
    %848 = vmatpush1.msra.mxu0 0.0
    %849 = vmatprep.subr.mxu0 0.0
    %850 = vmatpush1.msra.mxu0 0.0
    %851 = vmatprep.subr.mxu0 0.0
    %852 = vmatpush1.msra.mxu0 0.0
    %853 = vmatprep.subr.mxu0 0.0
    %854 = vmatpush1.msra.mxu0 0.0
    %855 = vmatprep.subr.mxu0 0.0
    %856 = vmatpush1.msra.mxu0 0.0
    %857 = vmatprep.mubr.f32.mxu0 0.0
    %858 = vmatmul.mubr.f32.gmra.mrb[0].mxu0 %v651
    %v859 = vpop.f32.mrb[0].mxu0
    %v860 = vadd.f32 %v790, %v859
    %v861 = vpop.f32.mrb[0].mxu0
    %862 = vdwg.mxu0
    %vm863 = vcmask 523264
    %864 = vst.msk [vmem:[#allocation2] sm:$0xff] %vm863, %v860
    // Predicated region
    $region30: #{tpu_custom_call.1} parent=1 // pred_check
      _
    $region31: #{tpu_custom_call.1} parent=1 // pred_check_branch
      %866 = sbr.rel (0) target = $region33
    $region32: #{tpu_custom_call.1} parent=1 // pred_region
      %s868 = ssub.s32 128, 128
      %869 = vsyncadd [#allocation3], %s868
      %s871 = sshll.u32 [#allocation2], 4
      %s872 = int_to_ptr.vmem [resolvable:$true] %s871
      %874 = dma.vmem_to_hbm [thread:$0]  %s872, 128, %s7, [#allocation3]
    $region33: #{tpu_custom_call.1} parent=1 // pred_fallthru
      _
    // Predicated region
    $region34: #{tpu_custom_call.1} parent=1 // pred_check
      _
    $region35: #{tpu_custom_call.1} parent=1 // pred_check_branch
      %876 = sbr.rel (0) target = $region37
    $region36: #{tpu_custom_call.1} parent=1 // pred_region
      %877 = dma.done [#allocation3], 128
    $region37: #{tpu_custom_call.1} parent=1 // pred_fallthru
      _
    %878 = vsyncpa [#allocation3], 1

</llo_original>
